<compile_context>
chip_gen: v5e
topology: v5e:2x2
jax: 0.10.0
libtpu: 0.0.40
codegen_flags: <defaults>
</compile_context>

<pallas_src>
import functools

import jax
import jax.numpy as jnp
from jax.experimental import pallas as pl
from jax.experimental.pallas import tpu as pltpu


# ---------------------------------------------------------------------------
# TPU-generation detection (tile size / VMEM budget / megacore are gen-aware)
# ---------------------------------------------------------------------------
@functools.lru_cache(maxsize=1)
def _tpu_config():
    """Return (tile_bytes, vmem_limit_bytes, min_blocks, bf16_native)."""
    kind = ""
    try:
        kind = jax.devices()[0].device_kind.lower()
    except Exception:  # pragma: no cover — backend query failure
        pass
    if "v5" in kind:
        # v5e: 128 MiB physical VMEM, 16 MiB scoped default, no bf16 VALU.
        return (3 * 1024 * 1024, 48 * 1024 * 1024, 1, False)
    if "v6" in kind:
        # v6e: 128 MiB physical VMEM, bf16-native VPU, 1 TensorCore.
        return (10 * 1024 * 1024, 64 * 1024 * 1024, 1, True)
    if "v7" in kind:
        # v7x: 64 MiB VMEM per TC, 2 TensorCores, bf16-native VPU.
        return (8 * 1024 * 1024, 48 * 1024 * 1024, 2, True)
    # Unknown chip: conservative defaults.
    return (4 * 1024 * 1024, 32 * 1024 * 1024, 1, False)


# ---------------------------------------------------------------------------
# Pallas kernel factory: o = -lambda * g   (backward hot path, HBM-bound)
# ---------------------------------------------------------------------------
def _make_neg_scale_kernel(native_dtype):
    """native_dtype=None -> compute in f32; else multiply in that dtype."""

    def kernel(lam_ref, g_ref, o_ref):
        lam = lam_ref[0]                                   # f32 scalar (SMEM)
        if native_dtype is not None:
            # bf16-native multiply on v6e/v7x: half the VALU work / vreg traffic.
            o_ref[...] = g_ref[...] * (-lam).astype(native_dtype)
        else:
            o_ref[...] = (g_ref[...].astype(jnp.float32) * (-lam)).astype(o_ref.dtype)

    return kernel


# ---------------------------------------------------------------------------
# Shape / tiling helpers
# ---------------------------------------------------------------------------
# Below this many elements the standalone kernel is launch/HBM overhead: XLA
# will usually fuse `-lambda*g` into the producer/consumer of g for ~zero
# extra HBM traffic, so small/medium grads skip Pallas entirely.
_PALLAS_MIN_ELEMS = 256 * 1024

# Widest lane-dense flattening first: fewer grid steps, better chance of an
# exact tiling. Width is always a multiple of 128 => unmasked lane-dense stores.
_WIDTHS = (8192, 4096, 2048, 1024, 512, 256, 128)


def _lane_dense_shape(total):
    for w in _WIDTHS:
        if total % w == 0:
            return total // w, w
    return None


def _choose_block_rows(rows, width, itemsize, tile_bytes, min_blocks):
    """Block rows: multiple of 8 (or full extent), ~tile_bytes per tile,
    at least `min_blocks` grid blocks, preferring an exact divisor of rows."""
    if rows <= 8:
        return rows                            # single full-extent block (legal)
    bytes_per_row = width * itemsize
    target = max(8, (tile_bytes // bytes_per_row) // 8 * 8)
    if min_blocks > 1:
        # Guarantee >= min_blocks grid blocks so every TensorCore gets work (v7x).
        cap = max(8, ((rows + min_blocks - 1) // min_blocks) // 8 * 8)
        target = min(target, cap)
    if target >= rows:
        return rows
    # Prefer a block size that divides rows exactly (no masked partial block).
    lo = max(8, (target // 2) // 8 * 8)
    for tr in range(target, lo - 1, -8):
        if rows % tr == 0:
            return tr
    return target


def _neg_scale_pallas(g, lam_f32):
    """Tiled, megacore-parallel Pallas backward: -lambda * g."""
    total = g.size
    shape2d = _lane_dense_shape(total)
    if shape2d is None:
        # Element count not a multiple of 128 lanes: let XLA handle it.
        return (g.astype(jnp.float32) * (-lam_f32)).astype(g.dtype)

    rows, width = shape2d
    g2 = g.reshape(rows, width)
    itemsize = jnp.dtype(g2.dtype).itemsize

    tile_bytes, vmem_limit, min_blocks, bf16_native = _tpu_config()
    tr = _choose_block_rows(rows, width, itemsize, tile_bytes, min_blocks)
    grid = (pl.cdiv(rows, tr),)

    native_dtype = jnp.bfloat16 if (bf16_native and g2.dtype == jnp.bfloat16) else None
    kernel = _make_neg_scale_kernel(native_dtype)

    lam_arr = lam_f32.reshape(1)               # f32 scalar in SMEM (32-bit path)

    out = pl.pallas_call(
        kernel,
        out_shape=jax.ShapeDtypeStruct(g2.shape, g2.dtype),
        grid=grid,
        in_specs=[
            pl.BlockSpec(memory_space=pltpu.SMEM),            # lambda scalar
            pl.BlockSpec((tr, width), lambda i: (i, 0)),      # grad tile
        ],
        out_specs=pl.BlockSpec((tr, width), lambda i: (i, 0)),
        # Scaled gradient overwrites g's HBM buffer (no extra output alloc
        # when g is a fusion-internal / donated buffer).
        input_output_aliases={1: 0},
        compiler_params=pltpu.CompilerParams(
            dimension_semantics=("parallel",),
            vmem_limit_bytes=vmem_limit),
        cost_estimate=pl.CostEstimate(
            flops=total,
            transcendentals=0,
            bytes_accessed=2 * total * itemsize),
    )(lam_arr, g2)
    return out.reshape(g.shape)


def _grl_backward(g, lam_f32):
    """Backward dispatch: Pallas for large lane-dense grads, XLA fusion otherwise."""
    if g.size >= _PALLAS_MIN_ELEMS and _lane_dense_shape(g.size) is not None:
        return _neg_scale_pallas(g, lam_f32)
    # Small / awkwardly shaped grads: fused multiply is effectively free.
    # (f32 compute to match the Pallas f32 path's rounding behaviour.)
    return (g.astype(jnp.float32) * (-lam_f32)).astype(g.dtype)


# ---------------------------------------------------------------------------
# custom_vjp reproducing GRLFunc: forward identity, backward -> -lambda * grad
# ---------------------------------------------------------------------------
@jax.custom_vjp
def _grl(x, lambda_):
    return x                                            # identity, zero cost


def _grl_fwd(x, lambda_):
    return x, lambda_


def _grl_bwd(lambda_, g):
    # grad wrt x = -lambda * g ; grad wrt lambda_ = 0 (PyTorch returns None).
    return _grl_backward(g, lambda_), jnp.zeros_like(lambda_)


_grl.defvjp(_grl_fwd, _grl_bwd)


def grl(x, lambda_):
    # Normalize lambda to an f32 scalar array before entering the custom_vjp,
    # so the fwd/bwd avals always match.
    return _grl(x, jnp.asarray(lambda_, dtype=jnp.float32))


class GRLModule:
    """JAX/Pallas equivalent of the PyTorch GRLModule."""

    def __init__(self, lambda_=0.0):
        self.lambda_ = jnp.asarray(lambda_, dtype=jnp.float32)

    def set_lambda(self, lambda_):
        self.lambda_ = jnp.asarray(lambda_, dtype=jnp.float32)

    def __call__(self, x):
        return grl(x, self.lambda_)


# ---------------------------------------------------------------------------
# Demo / self-check
# ---------------------------------------------------------------------------
if __name__ == "__main__":
    key = jax.random.PRNGKey(0)
    module = GRLModule(lambda_=0.5)

    # --- Small NCHW input (matches the PyTorch usage): forward + fused bwd ---
    x = jax.random.normal(key, (2, 4, 16, 16), dtype=jnp.float32)

    y = jax.block_until_ready(module(x))
    assert y.shape == x.shape and y.dtype == x.dtype
    assert jnp.array_equal(y, x), "forward must be identity"

    g_small = jax.block_until_ready(jax.grad(lambda inp: jnp.sum(module(inp)))(x))
    assert jnp.allclose(g_small, -0.5 * jnp.ones_like(x)), "backward must be -lambda*g"

    # --- Medium input: end-to-end grad goes through the tiled Pallas kernel ---
    x_med = jax.random.normal(key, (2, 4, 128, 256), dtype=jnp.float32)  # 256K elems
    g_med = jax.block_until_ready(jax.grad(lambda inp: jnp.sum(module(inp)))(x_med))
    assert jnp.allclose(g_med, -0.5 * jnp.ones_like(x_med)), "Pallas backward mismatch"

    # --- Direct Pallas-kernel checks with non-uniform gradient values ---
    x_big = jax.random.normal(key, (2, 4, 64, 64), dtype=jnp.float32)
    direct = jax.block_until_ready(
        _neg_scale_pallas(x_big, jnp.asarray(0.5, dtype=jnp.float32)))
    assert jnp.allclose(direct, -0.5 * x_big, rtol=1e-6, atol=1e-6)

    # bf16 path (native multiply on v6e/v7x, f32 compute elsewhere)
    x_bf = x_big.astype(jnp.bfloat16)
    direct_bf = jax.block_until_ready(
        _neg_scale_pallas(x_bf, jnp.asarray(0.5, dtype=jnp.float32)))
    ref_bf = (x_bf.astype(jnp.float32) * -0.5).astype(jnp.bfloat16)
    assert jnp.allclose(direct_bf.astype(jnp.float32), ref_bf.astype(jnp.float32),
                        rtol=1e-2, atol=1e-2)

    print("KERNEL_OK")
</pallas_src>

<mosaic_0001>
module attributes {stable_mosaic.version = 11 : i64} {
  func.func @kernel(%arg0: i32, %arg1: memref<1xf32, #tpu.memory_space<smem>>, %arg2: memref<32x8192xf32, #tpu.memory_space<vmem>>, %arg3: memref<32x8192xf32, #tpu.memory_space<vmem>>) attributes {dimension_semantics = [#tpu.dimension_semantics<parallel>], iteration_bounds = array<i64: 1>, scalar_prefetch = 0 : i64, scratch_operands = 0 : i64, tpu.core_type = #tpu.core_type<tc>, window_params = [{transform_indices = @transform_0, window_bounds = array<i64: 1>}, {transform_indices = @transform_1, window_bounds = array<i64: 32, 8192>}, {transform_indices = @transform_2, window_bounds = array<i64: 32, 8192>}]} {
    %c0 = arith.constant 0 : index
    %0 = memref.load %arg1[%c0] : memref<1xf32, #tpu.memory_space<smem>>
    %c0_0 = arith.constant 0 : index
    %c0_1 = arith.constant 0 : index
    %1 = vector.load %arg2[%c0_0, %c0_1] : memref<32x8192xf32, #tpu.memory_space<vmem>>, vector<32x8192xf32>
    %cst = arith.constant 0.000000e+00 : f32
    %2 = arith.subf %cst, %0 : f32
    %3 = vector.broadcast %2 : f32 to vector<32x8192xf32>
    %4 = arith.mulf %1, %3 : vector<32x8192xf32>
    %c0_2 = arith.constant 0 : index
    %c0_3 = arith.constant 0 : index
    %5 = vector.load %arg3[%c0_2, %c0_3] : memref<32x8192xf32, #tpu.memory_space<vmem>>, vector<32x8192xf32>
    tpu.vector_store %arg3[%c0_2, %c0_3], %4 {strides = array<i32>} : memref<32x8192xf32, #tpu.memory_space<vmem>>, vector<32x8192xf32>,
    return
  }
  func.func @transform_0(%arg0: i32) -> i32 {
    %c0_i32 = arith.constant 0 : i32
    %c0_i32_0 = arith.constant 0 : i32
    return %c0_i32 : i32
  }
  func.func @transform_1(%arg0: i32) -> (i32, i32) {
    %c0_i32 = arith.constant 0 : i32
    %c0_i32_0 = arith.constant 0 : i32
    return %arg0, %c0_i32 : i32, i32
  }
  func.func @transform_2(%arg0: i32) -> (i32, i32) {
    %c0_i32 = arith.constant 0 : i32
    %c0_i32_0 = arith.constant 0 : i32
    return %arg0, %c0_i32 : i32, i32
  }
}

</mosaic_0001>

<llo_original>
// kernel: tpu_custom_call.1
$region0: #{tpu_custom_call.1}
  #allocation0 [shape = 'u32[]', space=smem, size = 0x4, offset = 0x4, fixed_abs, tag = 'smem constant byte address 0x4 - core index']
  #allocation1 [shape = 'u32[72,128]{1,0:T(1,128)}', space=vmem, size = 0x9000, scoped, tag = 'internal scratch']
  #allocation2 [shape = 'f32[1]{0:T(128)S(6)}', space=smem, size = 0x200, scoped, tag = 'scoped memory for tpu_custom_call.1']
  %s0 = inlined_call_operand.<no memory space> [shape: f32[1], index: 0, kind: input, shape index: {}]
  %s1 = inlined_call_operand.hbm [shape: f32[32,8192], index: 1, kind: input, shape index: {}, may-alias: {1,2}]
  %s2 = inlined_call_operand.hbm [shape: f32[32,8192], index: 2, kind: output, shape index: {}, may-alias: {1,2}]
  %s3 = sld [smem:[#allocation0]]
  $region22: #{tpu_custom_call.1} parent=0
    _
  %s5 = ssub.s32 1, %s3
  %s6 = scalar_select 0, %s5, %s3
  %7 = sst [smem:[#allocation2]] %s0
  $region1: #{tpu_custom_call.1} parent=0
    #allocation3 [shape = 'u8[1048576]{0}', space=vmem, size = 0x100000, scoped, tag = 'input window, operand 1, single buffered']
    #allocation4 [shape = 's32[1]{0}', space=sflag, size = 0x4, scoped, tag = 'scoped memory for tpu_custom_call.1']
    #allocation5 [shape = 's32[1]{0}', space=sflag, size = 0x4, scoped, tag = 'scoped memory for tpu_custom_call.1']
    #allocation6 [shape = 'u8[1048576]{0}', space=vmem, size = 0x100000, scoped, tag = 'output window, operand 0, single buffered']
    %8 = vsyncpa [#allocation4], 0
    %9 = vsyncpa [#allocation5], 0
    // Predicated region
    $region2: #{tpu_custom_call.1} parent=1 // pred_check
      _
    $region3: #{tpu_custom_call.1} parent=1 // pred_check_branch
      %11 = sbr.rel (0) target = $region5
    $region4: #{tpu_custom_call.1} parent=1 // pred_region
      _
    $region5: #{tpu_custom_call.1} parent=1 // pred_fallthru
      _
    // Predicated region
    $region6: #{tpu_custom_call.1} parent=1 // pred_check
      _
    $region7: #{tpu_custom_call.1} parent=1 // pred_check_branch
      %13 = sbr.rel (0) target = $region9
    $region8: #{tpu_custom_call.1} parent=1 // pred_region
      %15 = vsyncadd [#allocation4], 0
      %s16 = sshll.u32 %s1, 4
      %s17 = int_to_ptr.hbm [resolvable:$true] %s16
      %s18 = sshll.u32 [#allocation3], 4
      %s19 = int_to_ptr.vmem [resolvable:$true] %s18
      %24 = dma.hbm_to_vmem [thread:$0]  %s17, 32768, %s19, [#allocation4], 8192, 8192, 512
    $region9: #{tpu_custom_call.1} parent=1 // pred_fallthru
      _
    // Predicated region
    $region10: #{tpu_custom_call.1} parent=1 // pred_check
      _
    $region11: #{tpu_custom_call.1} parent=1 // pred_check_branch
      %26 = sbr.rel (0) target = $region13
    $region12: #{tpu_custom_call.1} parent=1 // pred_region
      %28 = dma.done [#allocation4], 32768
    $region13: #{tpu_custom_call.1} parent=1 // pred_fallthru
      _
    %s29 = sld [smem:[#allocation2]]
    %v30 = vld [vmem:[#allocation3] sm:$0xff]
    %v31 = vld [vmem:[#allocation3 + $0x8] sm:$0xff]
    %v32 = vld [vmem:[#allocation3 + $0x10] sm:$0xff]
    %v33 = vld [vmem:[#allocation3 + $0x18] sm:$0xff]
    %v34 = vld [vmem:[#allocation3 + $0x20] sm:$0xff]
    %v35 = vld [vmem:[#allocation3 + $0x28] sm:$0xff]
    %v36 = vld [vmem:[#allocation3 + $0x30] sm:$0xff]
    %v37 = vld [vmem:[#allocation3 + $0x38] sm:$0xff]
    %v38 = vld [vmem:[#allocation3 + $0x40] sm:$0xff]
    %v39 = vld [vmem:[#allocation3 + $0x48] sm:$0xff]
    %v40 = vld [vmem:[#allocation3 + $0x50] sm:$0xff]
    %v41 = vld [vmem:[#allocation3 + $0x58] sm:$0xff]
    %v42 = vld [vmem:[#allocation3 + $0x60] sm:$0xff]
    %v43 = vld [vmem:[#allocation3 + $0x68] sm:$0xff]
    %v44 = vld [vmem:[#allocation3 + $0x70] sm:$0xff]
    %v45 = vld [vmem:[#allocation3 + $0x78] sm:$0xff]
    %v46 = vld [vmem:[#allocation3 + $0x80] sm:$0xff]
    %v47 = vld [vmem:[#allocation3 + $0x88] sm:$0xff]
    %v48 = vld [vmem:[#allocation3 + $0x90] sm:$0xff]
    %v49 = vld [vmem:[#allocation3 + $0x98] sm:$0xff]
    %v50 = vld [vmem:[#allocation3 + $0xa0] sm:$0xff]
    %v51 = vld [vmem:[#allocation3 + $0xa8] sm:$0xff]
    %v52 = vld [vmem:[#allocation3 + $0xb0] sm:$0xff]
    %v53 = vld [vmem:[#allocation3 + $0xb8] sm:$0xff]
    %v54 = vld [vmem:[#allocation3 + $0xc0] sm:$0xff]
    %v55 = vld [vmem:[#allocation3 + $0xc8] sm:$0xff]
    %v56 = vld [vmem:[#allocation3 + $0xd0] sm:$0xff]
    %v57 = vld [vmem:[#allocation3 + $0xd8] sm:$0xff]
    %v58 = vld [vmem:[#allocation3 + $0xe0] sm:$0xff]
    %v59 = vld [vmem:[#allocation3 + $0xe8] sm:$0xff]
    %v60 = vld [vmem:[#allocation3 + $0xf0] sm:$0xff]
    %v61 = vld [vmem:[#allocation3 + $0xf8] sm:$0xff]
    %v62 = vld [vmem:[#allocation3 + $0x100] sm:$0xff]
    %v63 = vld [vmem:[#allocation3 + $0x108] sm:$0xff]
    %v64 = vld [vmem:[#allocation3 + $0x110] sm:$0xff]
    %v65 = vld [vmem:[#allocation3 + $0x118] sm:$0xff]
    %v66 = vld [vmem:[#allocation3 + $0x120] sm:$0xff]
    %v67 = vld [vmem:[#allocation3 + $0x128] sm:$0xff]
    %v68 = vld [vmem:[#allocation3 + $0x130] sm:$0xff]
    %v69 = vld [vmem:[#allocation3 + $0x138] sm:$0xff]
    %v70 = vld [vmem:[#allocation3 + $0x140] sm:$0xff]
    %v71 = vld [vmem:[#allocation3 + $0x148] sm:$0xff]
    %v72 = vld [vmem:[#allocation3 + $0x150] sm:$0xff]
    %v73 = vld [vmem:[#allocation3 + $0x158] sm:$0xff]
    %v74 = vld [vmem:[#allocation3 + $0x160] sm:$0xff]
    %v75 = vld [vmem:[#allocation3 + $0x168] sm:$0xff]
    %v76 = vld [vmem:[#allocation3 + $0x170] sm:$0xff]
    %v77 = vld [vmem:[#allocation3 + $0x178] sm:$0xff]
    %v78 = vld [vmem:[#allocation3 + $0x180] sm:$0xff]
    %v79 = vld [vmem:[#allocation3 + $0x188] sm:$0xff]
    %v80 = vld [vmem:[#allocation3 + $0x190] sm:$0xff]
    %v81 = vld [vmem:[#allocation3 + $0x198] sm:$0xff]
    %v82 = vld [vmem:[#allocation3 + $0x1a0] sm:$0xff]
    %v83 = vld [vmem:[#allocation3 + $0x1a8] sm:$0xff]
    %v84 = vld [vmem:[#allocation3 + $0x1b0] sm:$0xff]
    %v85 = vld [vmem:[#allocation3 + $0x1b8] sm:$0xff]
    %v86 = vld [vmem:[#allocation3 + $0x1c0] sm:$0xff]
    %v87 = vld [vmem:[#allocation3 + $0x1c8] sm:$0xff]
    %v88 = vld [vmem:[#allocation3 + $0x1d0] sm:$0xff]
    %v89 = vld [vmem:[#allocation3 + $0x1d8] sm:$0xff]
    %v90 = vld [vmem:[#allocation3 + $0x1e0] sm:$0xff]
    %v91 = vld [vmem:[#allocation3 + $0x1e8] sm:$0xff]
    %v92 = vld [vmem:[#allocation3 + $0x1f0] sm:$0xff]
    %v93 = vld [vmem:[#allocation3 + $0x1f8] sm:$0xff]
    %v94 = vld [vmem:[#allocation3 + $0x200] sm:$0xff]
    %v95 = vld [vmem:[#allocation3 + $0x208] sm:$0xff]
    %v96 = vld [vmem:[#allocation3 + $0x210] sm:$0xff]
    %v97 = vld [vmem:[#allocation3 + $0x218] sm:$0xff]
    %v98 = vld [vmem:[#allocation3 + $0x220] sm:$0xff]
    %v99 = vld [vmem:[#allocation3 + $0x228] sm:$0xff]
    %v100 = vld [vmem:[#allocation3 + $0x230] sm:$0xff]
    %v101 = vld [vmem:[#allocation3 + $0x238] sm:$0xff]
    %v102 = vld [vmem:[#allocation3 + $0x240] sm:$0xff]
    %v103 = vld [vmem:[#allocation3 + $0x248] sm:$0xff]
    %v104 = vld [vmem:[#allocation3 + $0x250] sm:$0xff]
    %v105 = vld [vmem:[#allocation3 + $0x258] sm:$0xff]
    %v106 = vld [vmem:[#allocation3 + $0x260] sm:$0xff]
    %v107 = vld [vmem:[#allocation3 + $0x268] sm:$0xff]
    %v108 = vld [vmem:[#allocation3 + $0x270] sm:$0xff]
    %v109 = vld [vmem:[#allocation3 + $0x278] sm:$0xff]
    %v110 = vld [vmem:[#allocation3 + $0x280] sm:$0xff]
    %v111 = vld [vmem:[#allocation3 + $0x288] sm:$0xff]
    %v112 = vld [vmem:[#allocation3 + $0x290] sm:$0xff]
    %v113 = vld [vmem:[#allocation3 + $0x298] sm:$0xff]
    %v114 = vld [vmem:[#allocation3 + $0x2a0] sm:$0xff]
    %v115 = vld [vmem:[#allocation3 + $0x2a8] sm:$0xff]
    %v116 = vld [vmem:[#allocation3 + $0x2b0] sm:$0xff]
    %v117 = vld [vmem:[#allocation3 + $0x2b8] sm:$0xff]
    %v118 = vld [vmem:[#allocation3 + $0x2c0] sm:$0xff]
    %v119 = vld [vmem:[#allocation3 + $0x2c8] sm:$0xff]
    %v120 = vld [vmem:[#allocation3 + $0x2d0] sm:$0xff]
    %v121 = vld [vmem:[#allocation3 + $0x2d8] sm:$0xff]
    %v122 = vld [vmem:[#allocation3 + $0x2e0] sm:$0xff]
    %v123 = vld [vmem:[#allocation3 + $0x2e8] sm:$0xff]
    %v124 = vld [vmem:[#allocation3 + $0x2f0] sm:$0xff]
    %v125 = vld [vmem:[#allocation3 + $0x2f8] sm:$0xff]
    %v126 = vld [vmem:[#allocation3 + $0x300] sm:$0xff]
    %v127 = vld [vmem:[#allocation3 + $0x308] sm:$0xff]
    %v128 = vld [vmem:[#allocation3 + $0x310] sm:$0xff]
    %v129 = vld [vmem:[#allocation3 + $0x318] sm:$0xff]
    %v130 = vld [vmem:[#allocation3 + $0x320] sm:$0xff]
    %v131 = vld [vmem:[#allocation3 + $0x328] sm:$0xff]
    %v132 = vld [vmem:[#allocation3 + $0x330] sm:$0xff]
    %v133 = vld [vmem:[#allocation3 + $0x338] sm:$0xff]
    %v134 = vld [vmem:[#allocation3 + $0x340] sm:$0xff]
    %v135 = vld [vmem:[#allocation3 + $0x348] sm:$0xff]
    %v136 = vld [vmem:[#allocation3 + $0x350] sm:$0xff]
    %v137 = vld [vmem:[#allocation3 + $0x358] sm:$0xff]
    %v138 = vld [vmem:[#allocation3 + $0x360] sm:$0xff]
    %v139 = vld [vmem:[#allocation3 + $0x368] sm:$0xff]
    %v140 = vld [vmem:[#allocation3 + $0x370] sm:$0xff]
    %v141 = vld [vmem:[#allocation3 + $0x378] sm:$0xff]
    %v142 = vld [vmem:[#allocation3 + $0x380] sm:$0xff]
    %v143 = vld [vmem:[#allocation3 + $0x388] sm:$0xff]
    %v144 = vld [vmem:[#allocation3 + $0x390] sm:$0xff]
    %v145 = vld [vmem:[#allocation3 + $0x398] sm:$0xff]
    %v146 = vld [vmem:[#allocation3 + $0x3a0] sm:$0xff]
    %v147 = vld [vmem:[#allocation3 + $0x3a8] sm:$0xff]
    %v148 = vld [vmem:[#allocation3 + $0x3b0] sm:$0xff]
    %v149 = vld [vmem:[#allocation3 + $0x3b8] sm:$0xff]
    %v150 = vld [vmem:[#allocation3 + $0x3c0] sm:$0xff]
    %v151 = vld [vmem:[#allocation3 + $0x3c8] sm:$0xff]
    %v152 = vld [vmem:[#allocation3 + $0x3d0] sm:$0xff]
    %v153 = vld [vmem:[#allocation3 + $0x3d8] sm:$0xff]
    %v154 = vld [vmem:[#allocation3 + $0x3e0] sm:$0xff]
    %v155 = vld [vmem:[#allocation3 + $0x3e8] sm:$0xff]
    %v156 = vld [vmem:[#allocation3 + $0x3f0] sm:$0xff]
    %v157 = vld [vmem:[#allocation3 + $0x3f8] sm:$0xff]
    %v158 = vld [vmem:[#allocation3 + $0x400] sm:$0xff]
    %v159 = vld [vmem:[#allocation3 + $0x408] sm:$0xff]
    %v160 = vld [vmem:[#allocation3 + $0x410] sm:$0xff]
    %v161 = vld [vmem:[#allocation3 + $0x418] sm:$0xff]
    %v162 = vld [vmem:[#allocation3 + $0x420] sm:$0xff]
    %v163 = vld [vmem:[#allocation3 + $0x428] sm:$0xff]
    %v164 = vld [vmem:[#allocation3 + $0x430] sm:$0xff]
    %v165 = vld [vmem:[#allocation3 + $0x438] sm:$0xff]
    %v166 = vld [vmem:[#allocation3 + $0x440] sm:$0xff]
    %v167 = vld [vmem:[#allocation3 + $0x448] sm:$0xff]
    %v168 = vld [vmem:[#allocation3 + $0x450] sm:$0xff]
    %v169 = vld [vmem:[#allocation3 + $0x458] sm:$0xff]
    %v170 = vld [vmem:[#allocation3 + $0x460] sm:$0xff]
    %v171 = vld [vmem:[#allocation3 + $0x468] sm:$0xff]
    %v172 = vld [vmem:[#allocation3 + $0x470] sm:$0xff]
    %v173 = vld [vmem:[#allocation3 + $0x478] sm:$0xff]
    %v174 = vld [vmem:[#allocation3 + $0x480] sm:$0xff]
    %v175 = vld [vmem:[#allocation3 + $0x488] sm:$0xff]
    %v176 = vld [vmem:[#allocation3 + $0x490] sm:$0xff]
    %v177 = vld [vmem:[#allocation3 + $0x498] sm:$0xff]
    %v178 = vld [vmem:[#allocation3 + $0x4a0] sm:$0xff]
    %v179 = vld [vmem:[#allocation3 + $0x4a8] sm:$0xff]
    %v180 = vld [vmem:[#allocation3 + $0x4b0] sm:$0xff]
    %v181 = vld [vmem:[#allocation3 + $0x4b8] sm:$0xff]
    %v182 = vld [vmem:[#allocation3 + $0x4c0] sm:$0xff]
    %v183 = vld [vmem:[#allocation3 + $0x4c8] sm:$0xff]
    %v184 = vld [vmem:[#allocation3 + $0x4d0] sm:$0xff]
    %v185 = vld [vmem:[#allocation3 + $0x4d8] sm:$0xff]
    %v186 = vld [vmem:[#allocation3 + $0x4e0] sm:$0xff]
    %v187 = vld [vmem:[#allocation3 + $0x4e8] sm:$0xff]
    %v188 = vld [vmem:[#allocation3 + $0x4f0] sm:$0xff]
    %v189 = vld [vmem:[#allocation3 + $0x4f8] sm:$0xff]
    %v190 = vld [vmem:[#allocation3 + $0x500] sm:$0xff]
    %v191 = vld [vmem:[#allocation3 + $0x508] sm:$0xff]
    %v192 = vld [vmem:[#allocation3 + $0x510] sm:$0xff]
    %v193 = vld [vmem:[#allocation3 + $0x518] sm:$0xff]
    %v194 = vld [vmem:[#allocation3 + $0x520] sm:$0xff]
    %v195 = vld [vmem:[#allocation3 + $0x528] sm:$0xff]
    %v196 = vld [vmem:[#allocation3 + $0x530] sm:$0xff]
    %v197 = vld [vmem:[#allocation3 + $0x538] sm:$0xff]
    %v198 = vld [vmem:[#allocation3 + $0x540] sm:$0xff]
    %v199 = vld [vmem:[#allocation3 + $0x548] sm:$0xff]
    %v200 = vld [vmem:[#allocation3 + $0x550] sm:$0xff]
    %v201 = vld [vmem:[#allocation3 + $0x558] sm:$0xff]
    %v202 = vld [vmem:[#allocation3 + $0x560] sm:$0xff]
    %v203 = vld [vmem:[#allocation3 + $0x568] sm:$0xff]
    %v204 = vld [vmem:[#allocation3 + $0x570] sm:$0xff]
    %v205 = vld [vmem:[#allocation3 + $0x578] sm:$0xff]
    %v206 = vld [vmem:[#allocation3 + $0x580] sm:$0xff]
    %v207 = vld [vmem:[#allocation3 + $0x588] sm:$0xff]
    %v208 = vld [vmem:[#allocation3 + $0x590] sm:$0xff]
    %v209 = vld [vmem:[#allocation3 + $0x598] sm:$0xff]
    %v210 = vld [vmem:[#allocation3 + $0x5a0] sm:$0xff]
    %v211 = vld [vmem:[#allocation3 + $0x5a8] sm:$0xff]
    %v212 = vld [vmem:[#allocation3 + $0x5b0] sm:$0xff]
    %v213 = vld [vmem:[#allocation3 + $0x5b8] sm:$0xff]
    %v214 = vld [vmem:[#allocation3 + $0x5c0] sm:$0xff]
    %v215 = vld [vmem:[#allocation3 + $0x5c8] sm:$0xff]
    %v216 = vld [vmem:[#allocation3 + $0x5d0] sm:$0xff]
    %v217 = vld [vmem:[#allocation3 + $0x5d8] sm:$0xff]
    %v218 = vld [vmem:[#allocation3 + $0x5e0] sm:$0xff]
    %v219 = vld [vmem:[#allocation3 + $0x5e8] sm:$0xff]
    %v220 = vld [vmem:[#allocation3 + $0x5f0] sm:$0xff]
    %v221 = vld [vmem:[#allocation3 + $0x5f8] sm:$0xff]
    %v222 = vld [vmem:[#allocation3 + $0x600] sm:$0xff]
    %v223 = vld [vmem:[#allocation3 + $0x608] sm:$0xff]
    %v224 = vld [vmem:[#allocation3 + $0x610] sm:$0xff]
    %v225 = vld [vmem:[#allocation3 + $0x618] sm:$0xff]
    %v226 = vld [vmem:[#allocation3 + $0x620] sm:$0xff]
    %v227 = vld [vmem:[#allocation3 + $0x628] sm:$0xff]
    %v228 = vld [vmem:[#allocation3 + $0x630] sm:$0xff]
    %v229 = vld [vmem:[#allocation3 + $0x638] sm:$0xff]
    %v230 = vld [vmem:[#allocation3 + $0x640] sm:$0xff]
    %v231 = vld [vmem:[#allocation3 + $0x648] sm:$0xff]
    %v232 = vld [vmem:[#allocation3 + $0x650] sm:$0xff]
    %v233 = vld [vmem:[#allocation3 + $0x658] sm:$0xff]
    %v234 = vld [vmem:[#allocation3 + $0x660] sm:$0xff]
    %v235 = vld [vmem:[#allocation3 + $0x668] sm:$0xff]
    %v236 = vld [vmem:[#allocation3 + $0x670] sm:$0xff]
    %v237 = vld [vmem:[#allocation3 + $0x678] sm:$0xff]
    %v238 = vld [vmem:[#allocation3 + $0x680] sm:$0xff]
    %v239 = vld [vmem:[#allocation3 + $0x688] sm:$0xff]
    %v240 = vld [vmem:[#allocation3 + $0x690] sm:$0xff]
    %v241 = vld [vmem:[#allocation3 + $0x698] sm:$0xff]
    %v242 = vld [vmem:[#allocation3 + $0x6a0] sm:$0xff]
    %v243 = vld [vmem:[#allocation3 + $0x6a8] sm:$0xff]
    %v244 = vld [vmem:[#allocation3 + $0x6b0] sm:$0xff]
    %v245 = vld [vmem:[#allocation3 + $0x6b8] sm:$0xff]
    %v246 = vld [vmem:[#allocation3 + $0x6c0] sm:$0xff]
    %v247 = vld [vmem:[#allocation3 + $0x6c8] sm:$0xff]
    %v248 = vld [vmem:[#allocation3 + $0x6d0] sm:$0xff]
    %v249 = vld [vmem:[#allocation3 + $0x6d8] sm:$0xff]
    %v250 = vld [vmem:[#allocation3 + $0x6e0] sm:$0xff]
    %v251 = vld [vmem:[#allocation3 + $0x6e8] sm:$0xff]
    %v252 = vld [vmem:[#allocation3 + $0x6f0] sm:$0xff]
    %v253 = vld [vmem:[#allocation3 + $0x6f8] sm:$0xff]
    %v254 = vld [vmem:[#allocation3 + $0x700] sm:$0xff]
    %v255 = vld [vmem:[#allocation3 + $0x708] sm:$0xff]
    %v256 = vld [vmem:[#allocation3 + $0x710] sm:$0xff]
    %v257 = vld [vmem:[#allocation3 + $0x718] sm:$0xff]
    %v258 = vld [vmem:[#allocation3 + $0x720] sm:$0xff]
    %v259 = vld [vmem:[#allocation3 + $0x728] sm:$0xff]
    %v260 = vld [vmem:[#allocation3 + $0x730] sm:$0xff]
    %v261 = vld [vmem:[#allocation3 + $0x738] sm:$0xff]
    %v262 = vld [vmem:[#allocation3 + $0x740] sm:$0xff]
    %v263 = vld [vmem:[#allocation3 + $0x748] sm:$0xff]
    %v264 = vld [vmem:[#allocation3 + $0x750] sm:$0xff]
    %v265 = vld [vmem:[#allocation3 + $0x758] sm:$0xff]
    %v266 = vld [vmem:[#allocation3 + $0x760] sm:$0xff]
    %v267 = vld [vmem:[#allocation3 + $0x768] sm:$0xff]
    %v268 = vld [vmem:[#allocation3 + $0x770] sm:$0xff]
    %v269 = vld [vmem:[#allocation3 + $0x778] sm:$0xff]
    %v270 = vld [vmem:[#allocation3 + $0x780] sm:$0xff]
    %v271 = vld [vmem:[#allocation3 + $0x788] sm:$0xff]
    %v272 = vld [vmem:[#allocation3 + $0x790] sm:$0xff]
    %v273 = vld [vmem:[#allocation3 + $0x798] sm:$0xff]
    %v274 = vld [vmem:[#allocation3 + $0x7a0] sm:$0xff]
    %v275 = vld [vmem:[#allocation3 + $0x7a8] sm:$0xff]
    %v276 = vld [vmem:[#allocation3 + $0x7b0] sm:$0xff]
    %v277 = vld [vmem:[#allocation3 + $0x7b8] sm:$0xff]
    %v278 = vld [vmem:[#allocation3 + $0x7c0] sm:$0xff]
    %v279 = vld [vmem:[#allocation3 + $0x7c8] sm:$0xff]
    %v280 = vld [vmem:[#allocation3 + $0x7d0] sm:$0xff]
    %v281 = vld [vmem:[#allocation3 + $0x7d8] sm:$0xff]
    %v282 = vld [vmem:[#allocation3 + $0x7e0] sm:$0xff]
    %v283 = vld [vmem:[#allocation3 + $0x7e8] sm:$0xff]
    %v284 = vld [vmem:[#allocation3 + $0x7f0] sm:$0xff]
    %v285 = vld [vmem:[#allocation3 + $0x7f8] sm:$0xff]
    %s286 = ssub.f32 0.0, %s29
    %v287 = vstv %s286
    %v288 = vmul.f32 %v30, %v287
    %v289 = vmul.f32 %v31, %v287
    %v290 = vmul.f32 %v32, %v287
    %v291 = vmul.f32 %v33, %v287
    %v292 = vmul.f32 %v34, %v287
    %v293 = vmul.f32 %v35, %v287
    %v294 = vmul.f32 %v36, %v287
    %v295 = vmul.f32 %v37, %v287
    %v296 = vmul.f32 %v38, %v287
    %v297 = vmul.f32 %v39, %v287
    %v298 = vmul.f32 %v40, %v287
    %v299 = vmul.f32 %v41, %v287
    %v300 = vmul.f32 %v42, %v287
    %v301 = vmul.f32 %v43, %v287
    %v302 = vmul.f32 %v44, %v287
    %v303 = vmul.f32 %v45, %v287
    %v304 = vmul.f32 %v46, %v287
    %v305 = vmul.f32 %v47, %v287
    %v306 = vmul.f32 %v48, %v287
    %v307 = vmul.f32 %v49, %v287
    %v308 = vmul.f32 %v50, %v287
    %v309 = vmul.f32 %v51, %v287
    %v310 = vmul.f32 %v52, %v287
    %v311 = vmul.f32 %v53, %v287
    %v312 = vmul.f32 %v54, %v287
    %v313 = vmul.f32 %v55, %v287
    %v314 = vmul.f32 %v56, %v287
    %v315 = vmul.f32 %v57, %v287
    %v316 = vmul.f32 %v58, %v287
    %v317 = vmul.f32 %v59, %v287
    %v318 = vmul.f32 %v60, %v287
    %v319 = vmul.f32 %v61, %v287
    %v320 = vmul.f32 %v62, %v287
    %v321 = vmul.f32 %v63, %v287
    %v322 = vmul.f32 %v64, %v287
    %v323 = vmul.f32 %v65, %v287
    %v324 = vmul.f32 %v66, %v287
    %v325 = vmul.f32 %v67, %v287
    %v326 = vmul.f32 %v68, %v287
    %v327 = vmul.f32 %v69, %v287
    %v328 = vmul.f32 %v70, %v287
    %v329 = vmul.f32 %v71, %v287
    %v330 = vmul.f32 %v72, %v287
    %v331 = vmul.f32 %v73, %v287
    %v332 = vmul.f32 %v74, %v287
    %v333 = vmul.f32 %v75, %v287
    %v334 = vmul.f32 %v76, %v287
    %v335 = vmul.f32 %v77, %v287
    %v336 = vmul.f32 %v78, %v287
    %v337 = vmul.f32 %v79, %v287
    %v338 = vmul.f32 %v80, %v287
    %v339 = vmul.f32 %v81, %v287
    %v340 = vmul.f32 %v82, %v287
    %v341 = vmul.f32 %v83, %v287
    %v342 = vmul.f32 %v84, %v287
    %v343 = vmul.f32 %v85, %v287
    %v344 = vmul.f32 %v86, %v287
    %v345 = vmul.f32 %v87, %v287
    %v346 = vmul.f32 %v88, %v287
    %v347 = vmul.f32 %v89, %v287
    %v348 = vmul.f32 %v90, %v287
    %v349 = vmul.f32 %v91, %v287
    %v350 = vmul.f32 %v92, %v287
    %v351 = vmul.f32 %v93, %v287
    %v352 = vmul.f32 %v94, %v287
    %v353 = vmul.f32 %v95, %v287
    %v354 = vmul.f32 %v96, %v287
    %v355 = vmul.f32 %v97, %v287
    %v356 = vmul.f32 %v98, %v287
    %v357 = vmul.f32 %v99, %v287
    %v358 = vmul.f32 %v100, %v287
    %v359 = vmul.f32 %v101, %v287
    %v360 = vmul.f32 %v102, %v287
    %v361 = vmul.f32 %v103, %v287
    %v362 = vmul.f32 %v104, %v287
    %v363 = vmul.f32 %v105, %v287
    %v364 = vmul.f32 %v106, %v287
    %v365 = vmul.f32 %v107, %v287
    %v366 = vmul.f32 %v108, %v287
    %v367 = vmul.f32 %v109, %v287
    %v368 = vmul.f32 %v110, %v287
    %v369 = vmul.f32 %v111, %v287
    %v370 = vmul.f32 %v112, %v287
    %v371 = vmul.f32 %v113, %v287
    %v372 = vmul.f32 %v114, %v287
    %v373 = vmul.f32 %v115, %v287
    %v374 = vmul.f32 %v116, %v287
    %v375 = vmul.f32 %v117, %v287
    %v376 = vmul.f32 %v118, %v287
    %v377 = vmul.f32 %v119, %v287
    %v378 = vmul.f32 %v120, %v287
    %v379 = vmul.f32 %v121, %v287
    %v380 = vmul.f32 %v122, %v287
    %v381 = vmul.f32 %v123, %v287
    %v382 = vmul.f32 %v124, %v287
    %v383 = vmul.f32 %v125, %v287
    %v384 = vmul.f32 %v126, %v287
    %v385 = vmul.f32 %v127, %v287
    %v386 = vmul.f32 %v128, %v287
    %v387 = vmul.f32 %v129, %v287
    %v388 = vmul.f32 %v130, %v287
    %v389 = vmul.f32 %v131, %v287
    %v390 = vmul.f32 %v132, %v287
    %v391 = vmul.f32 %v133, %v287
    %v392 = vmul.f32 %v134, %v287
    %v393 = vmul.f32 %v135, %v287
    %v394 = vmul.f32 %v136, %v287
    %v395 = vmul.f32 %v137, %v287
    %v396 = vmul.f32 %v138, %v287
    %v397 = vmul.f32 %v139, %v287
    %v398 = vmul.f32 %v140, %v287
    %v399 = vmul.f32 %v141, %v287
    %v400 = vmul.f32 %v142, %v287
    %v401 = vmul.f32 %v143, %v287
    %v402 = vmul.f32 %v144, %v287
    %v403 = vmul.f32 %v145, %v287
    %v404 = vmul.f32 %v146, %v287
    %v405 = vmul.f32 %v147, %v287
    %v406 = vmul.f32 %v148, %v287
    %v407 = vmul.f32 %v149, %v287
    %v408 = vmul.f32 %v150, %v287
    %v409 = vmul.f32 %v151, %v287
    %v410 = vmul.f32 %v152, %v287
    %v411 = vmul.f32 %v153, %v287
    %v412 = vmul.f32 %v154, %v287
    %v413 = vmul.f32 %v155, %v287
    %v414 = vmul.f32 %v156, %v287
    %v415 = vmul.f32 %v157, %v287
    %v416 = vmul.f32 %v158, %v287
    %v417 = vmul.f32 %v159, %v287
    %v418 = vmul.f32 %v160, %v287
    %v419 = vmul.f32 %v161, %v287
    %v420 = vmul.f32 %v162, %v287
    %v421 = vmul.f32 %v163, %v287
    %v422 = vmul.f32 %v164, %v287
    %v423 = vmul.f32 %v165, %v287
    %v424 = vmul.f32 %v166, %v287
    %v425 = vmul.f32 %v167, %v287
    %v426 = vmul.f32 %v168, %v287
    %v427 = vmul.f32 %v169, %v287
    %v428 = vmul.f32 %v170, %v287
    %v429 = vmul.f32 %v171, %v287
    %v430 = vmul.f32 %v172, %v287
    %v431 = vmul.f32 %v173, %v287
    %v432 = vmul.f32 %v174, %v287
    %v433 = vmul.f32 %v175, %v287
    %v434 = vmul.f32 %v176, %v287
    %v435 = vmul.f32 %v177, %v287
    %v436 = vmul.f32 %v178, %v287
    %v437 = vmul.f32 %v179, %v287
    %v438 = vmul.f32 %v180, %v287
    %v439 = vmul.f32 %v181, %v287
    %v440 = vmul.f32 %v182, %v287
    %v441 = vmul.f32 %v183, %v287
    %v442 = vmul.f32 %v184, %v287
    %v443 = vmul.f32 %v185, %v287
    %v444 = vmul.f32 %v186, %v287
    %v445 = vmul.f32 %v187, %v287
    %v446 = vmul.f32 %v188, %v287
    %v447 = vmul.f32 %v189, %v287
    %v448 = vmul.f32 %v190, %v287
    %v449 = vmul.f32 %v191, %v287
    %v450 = vmul.f32 %v192, %v287
    %v451 = vmul.f32 %v193, %v287
    %v452 = vmul.f32 %v194, %v287
    %v453 = vmul.f32 %v195, %v287
    %v454 = vmul.f32 %v196, %v287
    %v455 = vmul.f32 %v197, %v287
    %v456 = vmul.f32 %v198, %v287
    %v457 = vmul.f32 %v199, %v287
    %v458 = vmul.f32 %v200, %v287
    %v459 = vmul.f32 %v201, %v287
    %v460 = vmul.f32 %v202, %v287
    %v461 = vmul.f32 %v203, %v287
    %v462 = vmul.f32 %v204, %v287
    %v463 = vmul.f32 %v205, %v287
    %v464 = vmul.f32 %v206, %v287
    %v465 = vmul.f32 %v207, %v287
    %v466 = vmul.f32 %v208, %v287
    %v467 = vmul.f32 %v209, %v287
    %v468 = vmul.f32 %v210, %v287
    %v469 = vmul.f32 %v211, %v287
    %v470 = vmul.f32 %v212, %v287
    %v471 = vmul.f32 %v213, %v287
    %v472 = vmul.f32 %v214, %v287
    %v473 = vmul.f32 %v215, %v287
    %v474 = vmul.f32 %v216, %v287
    %v475 = vmul.f32 %v217, %v287
    %v476 = vmul.f32 %v218, %v287
    %v477 = vmul.f32 %v219, %v287
    %v478 = vmul.f32 %v220, %v287
    %v479 = vmul.f32 %v221, %v287
    %v480 = vmul.f32 %v222, %v287
    %v481 = vmul.f32 %v223, %v287
    %v482 = vmul.f32 %v224, %v287
    %v483 = vmul.f32 %v225, %v287
    %v484 = vmul.f32 %v226, %v287
    %v485 = vmul.f32 %v227, %v287
    %v486 = vmul.f32 %v228, %v287
    %v487 = vmul.f32 %v229, %v287
    %v488 = vmul.f32 %v230, %v287
    %v489 = vmul.f32 %v231, %v287
    %v490 = vmul.f32 %v232, %v287
    %v491 = vmul.f32 %v233, %v287
    %v492 = vmul.f32 %v234, %v287
    %v493 = vmul.f32 %v235, %v287
    %v494 = vmul.f32 %v236, %v287
    %v495 = vmul.f32 %v237, %v287
    %v496 = vmul.f32 %v238, %v287
    %v497 = vmul.f32 %v239, %v287
    %v498 = vmul.f32 %v240, %v287
    %v499 = vmul.f32 %v241, %v287
    %v500 = vmul.f32 %v242, %v287
    %v501 = vmul.f32 %v243, %v287
    %v502 = vmul.f32 %v244, %v287
    %v503 = vmul.f32 %v245, %v287
    %v504 = vmul.f32 %v246, %v287
    %v505 = vmul.f32 %v247, %v287
    %v506 = vmul.f32 %v248, %v287
    %v507 = vmul.f32 %v249, %v287
    %v508 = vmul.f32 %v250, %v287
    %v509 = vmul.f32 %v251, %v287
    %v510 = vmul.f32 %v252, %v287
    %v511 = vmul.f32 %v253, %v287
    %v512 = vmul.f32 %v254, %v287
    %v513 = vmul.f32 %v255, %v287
    %v514 = vmul.f32 %v256, %v287
    %v515 = vmul.f32 %v257, %v287
    %v516 = vmul.f32 %v258, %v287
    %v517 = vmul.f32 %v259, %v287
    %v518 = vmul.f32 %v260, %v287
    %v519 = vmul.f32 %v261, %v287
    %v520 = vmul.f32 %v262, %v287
    %v521 = vmul.f32 %v263, %v287
    %v522 = vmul.f32 %v264, %v287
    %v523 = vmul.f32 %v265, %v287
    %v524 = vmul.f32 %v266, %v287
    %v525 = vmul.f32 %v267, %v287
    %v526 = vmul.f32 %v268, %v287
    %v527 = vmul.f32 %v269, %v287
    %v528 = vmul.f32 %v270, %v287
    %v529 = vmul.f32 %v271, %v287
    %v530 = vmul.f32 %v272, %v287
    %v531 = vmul.f32 %v273, %v287
    %v532 = vmul.f32 %v274, %v287
    %v533 = vmul.f32 %v275, %v287
    %v534 = vmul.f32 %v276, %v287
    %v535 = vmul.f32 %v277, %v287
    %v536 = vmul.f32 %v278, %v287
    %v537 = vmul.f32 %v279, %v287
    %v538 = vmul.f32 %v280, %v287
    %v539 = vmul.f32 %v281, %v287
    %v540 = vmul.f32 %v282, %v287
    %v541 = vmul.f32 %v283, %v287
    %v542 = vmul.f32 %v284, %v287
    %v543 = vmul.f32 %v285, %v287
    %544 = vst [vmem:[#allocation6] sm:$0xff] %v288
    %545 = vst [vmem:[#allocation6 + $0x8] sm:$0xff] %v289
    %546 = vst [vmem:[#allocation6 + $0x10] sm:$0xff] %v290
    %547 = vst [vmem:[#allocation6 + $0x18] sm:$0xff] %v291
    %548 = vst [vmem:[#allocation6 + $0x20] sm:$0xff] %v292
    %549 = vst [vmem:[#allocation6 + $0x28] sm:$0xff] %v293
    %550 = vst [vmem:[#allocation6 + $0x30] sm:$0xff] %v294
    %551 = vst [vmem:[#allocation6 + $0x38] sm:$0xff] %v295
    %552 = vst [vmem:[#allocation6 + $0x40] sm:$0xff] %v296
    %553 = vst [vmem:[#allocation6 + $0x48] sm:$0xff] %v297
    %554 = vst [vmem:[#allocation6 + $0x50] sm:$0xff] %v298
    %555 = vst [vmem:[#allocation6 + $0x58] sm:$0xff] %v299
    %556 = vst [vmem:[#allocation6 + $0x60] sm:$0xff] %v300
    %557 = vst [vmem:[#allocation6 + $0x68] sm:$0xff] %v301
    %558 = vst [vmem:[#allocation6 + $0x70] sm:$0xff] %v302
    %559 = vst [vmem:[#allocation6 + $0x78] sm:$0xff] %v303
    %560 = vst [vmem:[#allocation6 + $0x80] sm:$0xff] %v304
    %561 = vst [vmem:[#allocation6 + $0x88] sm:$0xff] %v305
    %562 = vst [vmem:[#allocation6 + $0x90] sm:$0xff] %v306
    %563 = vst [vmem:[#allocation6 + $0x98] sm:$0xff] %v307
    %564 = vst [vmem:[#allocation6 + $0xa0] sm:$0xff] %v308
    %565 = vst [vmem:[#allocation6 + $0xa8] sm:$0xff] %v309
    %566 = vst [vmem:[#allocation6 + $0xb0] sm:$0xff] %v310
    %567 = vst [vmem:[#allocation6 + $0xb8] sm:$0xff] %v311
    %568 = vst [vmem:[#allocation6 + $0xc0] sm:$0xff] %v312
    %569 = vst [vmem:[#allocation6 + $0xc8] sm:$0xff] %v313
    %570 = vst [vmem:[#allocation6 + $0xd0] sm:$0xff] %v314
    %571 = vst [vmem:[#allocation6 + $0xd8] sm:$0xff] %v315
    %572 = vst [vmem:[#allocation6 + $0xe0] sm:$0xff] %v316
    %573 = vst [vmem:[#allocation6 + $0xe8] sm:$0xff] %v317
    %574 = vst [vmem:[#allocation6 + $0xf0] sm:$0xff] %v318
    %575 = vst [vmem:[#allocation6 + $0xf8] sm:$0xff] %v319
    %576 = vst [vmem:[#allocation6 + $0x100] sm:$0xff] %v320
    %577 = vst [vmem:[#allocation6 + $0x108] sm:$0xff] %v321
    %578 = vst [vmem:[#allocation6 + $0x110] sm:$0xff] %v322
    %579 = vst [vmem:[#allocation6 + $0x118] sm:$0xff] %v323
    %580 = vst [vmem:[#allocation6 + $0x120] sm:$0xff] %v324
    %581 = vst [vmem:[#allocation6 + $0x128] sm:$0xff] %v325
    %582 = vst [vmem:[#allocation6 + $0x130] sm:$0xff] %v326
    %583 = vst [vmem:[#allocation6 + $0x138] sm:$0xff] %v327
    %584 = vst [vmem:[#allocation6 + $0x140] sm:$0xff] %v328
    %585 = vst [vmem:[#allocation6 + $0x148] sm:$0xff] %v329
    %586 = vst [vmem:[#allocation6 + $0x150] sm:$0xff] %v330
    %587 = vst [vmem:[#allocation6 + $0x158] sm:$0xff] %v331
    %588 = vst [vmem:[#allocation6 + $0x160] sm:$0xff] %v332
    %589 = vst [vmem:[#allocation6 + $0x168] sm:$0xff] %v333
    %590 = vst [vmem:[#allocation6 + $0x170] sm:$0xff] %v334
    %591 = vst [vmem:[#allocation6 + $0x178] sm:$0xff] %v335
    %592 = vst [vmem:[#allocation6 + $0x180] sm:$0xff] %v336
    %593 = vst [vmem:[#allocation6 + $0x188] sm:$0xff] %v337
    %594 = vst [vmem:[#allocation6 + $0x190] sm:$0xff] %v338
    %595 = vst [vmem:[#allocation6 + $0x198] sm:$0xff] %v339
    %596 = vst [vmem:[#allocation6 + $0x1a0] sm:$0xff] %v340
    %597 = vst [vmem:[#allocation6 + $0x1a8] sm:$0xff] %v341
    %598 = vst [vmem:[#allocation6 + $0x1b0] sm:$0xff] %v342
    %599 = vst [vmem:[#allocation6 + $0x1b8] sm:$0xff] %v343
    %600 = vst [vmem:[#allocation6 + $0x1c0] sm:$0xff] %v344
    %601 = vst [vmem:[#allocation6 + $0x1c8] sm:$0xff] %v345
    %602 = vst [vmem:[#allocation6 + $0x1d0] sm:$0xff] %v346
    %603 = vst [vmem:[#allocation6 + $0x1d8] sm:$0xff] %v347
    %604 = vst [vmem:[#allocation6 + $0x1e0] sm:$0xff] %v348
    %605 = vst [vmem:[#allocation6 + $0x1e8] sm:$0xff] %v349
    %606 = vst [vmem:[#allocation6 + $0x1f0] sm:$0xff] %v350
    %607 = vst [vmem:[#allocation6 + $0x1f8] sm:$0xff] %v351
    %608 = vst [vmem:[#allocation6 + $0x200] sm:$0xff] %v352
    %609 = vst [vmem:[#allocation6 + $0x208] sm:$0xff] %v353
    %610 = vst [vmem:[#allocation6 + $0x210] sm:$0xff] %v354
    %611 = vst [vmem:[#allocation6 + $0x218] sm:$0xff] %v355
    %612 = vst [vmem:[#allocation6 + $0x220] sm:$0xff] %v356
    %613 = vst [vmem:[#allocation6 + $0x228] sm:$0xff] %v357
    %614 = vst [vmem:[#allocation6 + $0x230] sm:$0xff] %v358
    %615 = vst [vmem:[#allocation6 + $0x238] sm:$0xff] %v359
    %616 = vst [vmem:[#allocation6 + $0x240] sm:$0xff] %v360
    %617 = vst [vmem:[#allocation6 + $0x248] sm:$0xff] %v361
    %618 = vst [vmem:[#allocation6 + $0x250] sm:$0xff] %v362
    %619 = vst [vmem:[#allocation6 + $0x258] sm:$0xff] %v363
    %620 = vst [vmem:[#allocation6 + $0x260] sm:$0xff] %v364
    %621 = vst [vmem:[#allocation6 + $0x268] sm:$0xff] %v365
    %622 = vst [vmem:[#allocation6 + $0x270] sm:$0xff] %v366
    %623 = vst [vmem:[#allocation6 + $0x278] sm:$0xff] %v367
    %624 = vst [vmem:[#allocation6 + $0x280] sm:$0xff] %v368
    %625 = vst [vmem:[#allocation6 + $0x288] sm:$0xff] %v369
    %626 = vst [vmem:[#allocation6 + $0x290] sm:$0xff] %v370
    %627 = vst [vmem:[#allocation6 + $0x298] sm:$0xff] %v371
    %628 = vst [vmem:[#allocation6 + $0x2a0] sm:$0xff] %v372
    %629 = vst [vmem:[#allocation6 + $0x2a8] sm:$0xff] %v373
    %630 = vst [vmem:[#allocation6 + $0x2b0] sm:$0xff] %v374
    %631 = vst [vmem:[#allocation6 + $0x2b8] sm:$0xff] %v375
    %632 = vst [vmem:[#allocation6 + $0x2c0] sm:$0xff] %v376
    %633 = vst [vmem:[#allocation6 + $0x2c8] sm:$0xff] %v377
    %634 = vst [vmem:[#allocation6 + $0x2d0] sm:$0xff] %v378
    %635 = vst [vmem:[#allocation6 + $0x2d8] sm:$0xff] %v379
    %636 = vst [vmem:[#allocation6 + $0x2e0] sm:$0xff] %v380
    %637 = vst [vmem:[#allocation6 + $0x2e8] sm:$0xff] %v381
    %638 = vst [vmem:[#allocation6 + $0x2f0] sm:$0xff] %v382
    %639 = vst [vmem:[#allocation6 + $0x2f8] sm:$0xff] %v383
    %640 = vst [vmem:[#allocation6 + $0x300] sm:$0xff] %v384
    %641 = vst [vmem:[#allocation6 + $0x308] sm:$0xff] %v385
    %642 = vst [vmem:[#allocation6 + $0x310] sm:$0xff] %v386
    %643 = vst [vmem:[#allocation6 + $0x318] sm:$0xff] %v387
    %644 = vst [vmem:[#allocation6 + $0x320] sm:$0xff] %v388
    %645 = vst [vmem:[#allocation6 + $0x328] sm:$0xff] %v389
    %646 = vst [vmem:[#allocation6 + $0x330] sm:$0xff] %v390
    %647 = vst [vmem:[#allocation6 + $0x338] sm:$0xff] %v391
    %648 = vst [vmem:[#allocation6 + $0x340] sm:$0xff] %v392
    %649 = vst [vmem:[#allocation6 + $0x348] sm:$0xff] %v393
    %650 = vst [vmem:[#allocation6 + $0x350] sm:$0xff] %v394
    %651 = vst [vmem:[#allocation6 + $0x358] sm:$0xff] %v395
    %652 = vst [vmem:[#allocation6 + $0x360] sm:$0xff] %v396
    %653 = vst [vmem:[#allocation6 + $0x368] sm:$0xff] %v397
    %654 = vst [vmem:[#allocation6 + $0x370] sm:$0xff] %v398
    %655 = vst [vmem:[#allocation6 + $0x378] sm:$0xff] %v399
    %656 = vst [vmem:[#allocation6 + $0x380] sm:$0xff] %v400
    %657 = vst [vmem:[#allocation6 + $0x388] sm:$0xff] %v401
    %658 = vst [vmem:[#allocation6 + $0x390] sm:$0xff] %v402
    %659 = vst [vmem:[#allocation6 + $0x398] sm:$0xff] %v403
    %660 = vst [vmem:[#allocation6 + $0x3a0] sm:$0xff] %v404
    %661 = vst [vmem:[#allocation6 + $0x3a8] sm:$0xff] %v405
    %662 = vst [vmem:[#allocation6 + $0x3b0] sm:$0xff] %v406
    %663 = vst [vmem:[#allocation6 + $0x3b8] sm:$0xff] %v407
    %664 = vst [vmem:[#allocation6 + $0x3c0] sm:$0xff] %v408
    %665 = vst [vmem:[#allocation6 + $0x3c8] sm:$0xff] %v409
    %666 = vst [vmem:[#allocation6 + $0x3d0] sm:$0xff] %v410
    %667 = vst [vmem:[#allocation6 + $0x3d8] sm:$0xff] %v411
    %668 = vst [vmem:[#allocation6 + $0x3e0] sm:$0xff] %v412
    %669 = vst [vmem:[#allocation6 + $0x3e8] sm:$0xff] %v413
    %670 = vst [vmem:[#allocation6 + $0x3f0] sm:$0xff] %v414
    %671 = vst [vmem:[#allocation6 + $0x3f8] sm:$0xff] %v415
    %672 = vst [vmem:[#allocation6 + $0x400] sm:$0xff] %v416
    %673 = vst [vmem:[#allocation6 + $0x408] sm:$0xff] %v417
    %674 = vst [vmem:[#allocation6 + $0x410] sm:$0xff] %v418
    %675 = vst [vmem:[#allocation6 + $0x418] sm:$0xff] %v419
    %676 = vst [vmem:[#allocation6 + $0x420] sm:$0xff] %v420
    %677 = vst [vmem:[#allocation6 + $0x428] sm:$0xff] %v421
    %678 = vst [vmem:[#allocation6 + $0x430] sm:$0xff] %v422
    %679 = vst [vmem:[#allocation6 + $0x438] sm:$0xff] %v423
    %680 = vst [vmem:[#allocation6 + $0x440] sm:$0xff] %v424
    %681 = vst [vmem:[#allocation6 + $0x448] sm:$0xff] %v425
    %682 = vst [vmem:[#allocation6 + $0x450] sm:$0xff] %v426
    %683 = vst [vmem:[#allocation6 + $0x458] sm:$0xff] %v427
    %684 = vst [vmem:[#allocation6 + $0x460] sm:$0xff] %v428
    %685 = vst [vmem:[#allocation6 + $0x468] sm:$0xff] %v429
    %686 = vst [vmem:[#allocation6 + $0x470] sm:$0xff] %v430
    %687 = vst [vmem:[#allocation6 + $0x478] sm:$0xff] %v431
    %688 = vst [vmem:[#allocation6 + $0x480] sm:$0xff] %v432
    %689 = vst [vmem:[#allocation6 + $0x488] sm:$0xff] %v433
    %690 = vst [vmem:[#allocation6 + $0x490] sm:$0xff] %v434
    %691 = vst [vmem:[#allocation6 + $0x498] sm:$0xff] %v435
    %692 = vst [vmem:[#allocation6 + $0x4a0] sm:$0xff] %v436
    %693 = vst [vmem:[#allocation6 + $0x4a8] sm:$0xff] %v437
    %694 = vst [vmem:[#allocation6 + $0x4b0] sm:$0xff] %v438
    %695 = vst [vmem:[#allocation6 + $0x4b8] sm:$0xff] %v439
    %696 = vst [vmem:[#allocation6 + $0x4c0] sm:$0xff] %v440
    %697 = vst [vmem:[#allocation6 + $0x4c8] sm:$0xff] %v441
    %698 = vst [vmem:[#allocation6 + $0x4d0] sm:$0xff] %v442
    %699 = vst [vmem:[#allocation6 + $0x4d8] sm:$0xff] %v443
    %700 = vst [vmem:[#allocation6 + $0x4e0] sm:$0xff] %v444
    %701 = vst [vmem:[#allocation6 + $0x4e8] sm:$0xff] %v445
    %702 = vst [vmem:[#allocation6 + $0x4f0] sm:$0xff] %v446
    %703 = vst [vmem:[#allocation6 + $0x4f8] sm:$0xff] %v447
    %704 = vst [vmem:[#allocation6 + $0x500] sm:$0xff] %v448
    %705 = vst [vmem:[#allocation6 + $0x508] sm:$0xff] %v449
    %706 = vst [vmem:[#allocation6 + $0x510] sm:$0xff] %v450
    %707 = vst [vmem:[#allocation6 + $0x518] sm:$0xff] %v451
    %708 = vst [vmem:[#allocation6 + $0x520] sm:$0xff] %v452
    %709 = vst [vmem:[#allocation6 + $0x528] sm:$0xff] %v453
    %710 = vst [vmem:[#allocation6 + $0x530] sm:$0xff] %v454
    %711 = vst [vmem:[#allocation6 + $0x538] sm:$0xff] %v455
    %712 = vst [vmem:[#allocation6 + $0x540] sm:$0xff] %v456
    %713 = vst [vmem:[#allocation6 + $0x548] sm:$0xff] %v457
    %714 = vst [vmem:[#allocation6 + $0x550] sm:$0xff] %v458
    %715 = vst [vmem:[#allocation6 + $0x558] sm:$0xff] %v459
    %716 = vst [vmem:[#allocation6 + $0x560] sm:$0xff] %v460
    %717 = vst [vmem:[#allocation6 + $0x568] sm:$0xff] %v461
    %718 = vst [vmem:[#allocation6 + $0x570] sm:$0xff] %v462
    %719 = vst [vmem:[#allocation6 + $0x578] sm:$0xff] %v463
    %720 = vst [vmem:[#allocation6 + $0x580] sm:$0xff] %v464
    %721 = vst [vmem:[#allocation6 + $0x588] sm:$0xff] %v465
    %722 = vst [vmem:[#allocation6 + $0x590] sm:$0xff] %v466
    %723 = vst [vmem:[#allocation6 + $0x598] sm:$0xff] %v467
    %724 = vst [vmem:[#allocation6 + $0x5a0] sm:$0xff] %v468
    %725 = vst [vmem:[#allocation6 + $0x5a8] sm:$0xff] %v469
    %726 = vst [vmem:[#allocation6 + $0x5b0] sm:$0xff] %v470
    %727 = vst [vmem:[#allocation6 + $0x5b8] sm:$0xff] %v471
    %728 = vst [vmem:[#allocation6 + $0x5c0] sm:$0xff] %v472
    %729 = vst [vmem:[#allocation6 + $0x5c8] sm:$0xff] %v473
    %730 = vst [vmem:[#allocation6 + $0x5d0] sm:$0xff] %v474
    %731 = vst [vmem:[#allocation6 + $0x5d8] sm:$0xff] %v475
    %732 = vst [vmem:[#allocation6 + $0x5e0] sm:$0xff] %v476
    %733 = vst [vmem:[#allocation6 + $0x5e8] sm:$0xff] %v477
    %734 = vst [vmem:[#allocation6 + $0x5f0] sm:$0xff] %v478
    %735 = vst [vmem:[#allocation6 + $0x5f8] sm:$0xff] %v479
    %736 = vst [vmem:[#allocation6 + $0x600] sm:$0xff] %v480
    %737 = vst [vmem:[#allocation6 + $0x608] sm:$0xff] %v481
    %738 = vst [vmem:[#allocation6 + $0x610] sm:$0xff] %v482
    %739 = vst [vmem:[#allocation6 + $0x618] sm:$0xff] %v483
    %740 = vst [vmem:[#allocation6 + $0x620] sm:$0xff] %v484
    %741 = vst [vmem:[#allocation6 + $0x628] sm:$0xff] %v485
    %742 = vst [vmem:[#allocation6 + $0x630] sm:$0xff] %v486
    %743 = vst [vmem:[#allocation6 + $0x638] sm:$0xff] %v487
    %744 = vst [vmem:[#allocation6 + $0x640] sm:$0xff] %v488
    %745 = vst [vmem:[#allocation6 + $0x648] sm:$0xff] %v489
    %746 = vst [vmem:[#allocation6 + $0x650] sm:$0xff] %v490
    %747 = vst [vmem:[#allocation6 + $0x658] sm:$0xff] %v491
    %748 = vst [vmem:[#allocation6 + $0x660] sm:$0xff] %v492
    %749 = vst [vmem:[#allocation6 + $0x668] sm:$0xff] %v493
    %750 = vst [vmem:[#allocation6 + $0x670] sm:$0xff] %v494
    %751 = vst [vmem:[#allocation6 + $0x678] sm:$0xff] %v495
    %752 = vst [vmem:[#allocation6 + $0x680] sm:$0xff] %v496
    %753 = vst [vmem:[#allocation6 + $0x688] sm:$0xff] %v497
    %754 = vst [vmem:[#allocation6 + $0x690] sm:$0xff] %v498
    %755 = vst [vmem:[#allocation6 + $0x698] sm:$0xff] %v499
    %756 = vst [vmem:[#allocation6 + $0x6a0] sm:$0xff] %v500
    %757 = vst [vmem:[#allocation6 + $0x6a8] sm:$0xff] %v501
    %758 = vst [vmem:[#allocation6 + $0x6b0] sm:$0xff] %v502
    %759 = vst [vmem:[#allocation6 + $0x6b8] sm:$0xff] %v503
    %760 = vst [vmem:[#allocation6 + $0x6c0] sm:$0xff] %v504
    %761 = vst [vmem:[#allocation6 + $0x6c8] sm:$0xff] %v505
    %762 = vst [vmem:[#allocation6 + $0x6d0] sm:$0xff] %v506
    %763 = vst [vmem:[#allocation6 + $0x6d8] sm:$0xff] %v507
    %764 = vst [vmem:[#allocation6 + $0x6e0] sm:$0xff] %v508
    %765 = vst [vmem:[#allocation6 + $0x6e8] sm:$0xff] %v509
    %766 = vst [vmem:[#allocation6 + $0x6f0] sm:$0xff] %v510
    %767 = vst [vmem:[#allocation6 + $0x6f8] sm:$0xff] %v511
    %768 = vst [vmem:[#allocation6 + $0x700] sm:$0xff] %v512
    %769 = vst [vmem:[#allocation6 + $0x708] sm:$0xff] %v513
    %770 = vst [vmem:[#allocation6 + $0x710] sm:$0xff] %v514
    %771 = vst [vmem:[#allocation6 + $0x718] sm:$0xff] %v515
    %772 = vst [vmem:[#allocation6 + $0x720] sm:$0xff] %v516
    %773 = vst [vmem:[#allocation6 + $0x728] sm:$0xff] %v517
    %774 = vst [vmem:[#allocation6 + $0x730] sm:$0xff] %v518
    %775 = vst [vmem:[#allocation6 + $0x738] sm:$0xff] %v519
    %776 = vst [vmem:[#allocation6 + $0x740] sm:$0xff] %v520
    %777 = vst [vmem:[#allocation6 + $0x748] sm:$0xff] %v521
    %778 = vst [vmem:[#allocation6 + $0x750] sm:$0xff] %v522
    %779 = vst [vmem:[#allocation6 + $0x758] sm:$0xff] %v523
    %780 = vst [vmem:[#allocation6 + $0x760] sm:$0xff] %v524
    %781 = vst [vmem:[#allocation6 + $0x768] sm:$0xff] %v525
    %782 = vst [vmem:[#allocation6 + $0x770] sm:$0xff] %v526
    %783 = vst [vmem:[#allocation6 + $0x778] sm:$0xff] %v527
    %784 = vst [vmem:[#allocation6 + $0x780] sm:$0xff] %v528
    %785 = vst [vmem:[#allocation6 + $0x788] sm:$0xff] %v529
    %786 = vst [vmem:[#allocation6 + $0x790] sm:$0xff] %v530
    %787 = vst [vmem:[#allocation6 + $0x798] sm:$0xff] %v531
    %788 = vst [vmem:[#allocation6 + $0x7a0] sm:$0xff] %v532
    %789 = vst [vmem:[#allocation6 + $0x7a8] sm:$0xff] %v533
    %790 = vst [vmem:[#allocation6 + $0x7b0] sm:$0xff] %v534
    %791 = vst [vmem:[#allocation6 + $0x7b8] sm:$0xff] %v535
    %792 = vst [vmem:[#allocation6 + $0x7c0] sm:$0xff] %v536
    %793 = vst [vmem:[#allocation6 + $0x7c8] sm:$0xff] %v537
    %794 = vst [vmem:[#allocation6 + $0x7d0] sm:$0xff] %v538
    %795 = vst [vmem:[#allocation6 + $0x7d8] sm:$0xff] %v539
    %796 = vst [vmem:[#allocation6 + $0x7e0] sm:$0xff] %v540
    %797 = vst [vmem:[#allocation6 + $0x7e8] sm:$0xff] %v541
    %798 = vst [vmem:[#allocation6 + $0x7f0] sm:$0xff] %v542
    %799 = vst [vmem:[#allocation6 + $0x7f8] sm:$0xff] %v543
    // Predicated region
    $region14: #{tpu_custom_call.1} parent=1 // pred_check
      _
    $region15: #{tpu_custom_call.1} parent=1 // pred_check_branch
      %801 = sbr.rel (0) target = $region17
    $region16: #{tpu_custom_call.1} parent=1 // pred_region
      %803 = vsyncadd [#allocation5], 0
      %s804 = sshll.u32 [#allocation6], 4
      %s805 = int_to_ptr.vmem [resolvable:$true] %s804
      %s806 = sshll.u32 %s2, 4
      %s807 = int_to_ptr.hbm [resolvable:$true] %s806
      %812 = dma.vmem_to_hbm [thread:$0]  %s805, 32768, %s807, [#allocation5], 8192, 8192, 512
    $region17: #{tpu_custom_call.1} parent=1 // pred_fallthru
      _
    // Predicated region
    $region18: #{tpu_custom_call.1} parent=1 // pred_check
      _
    $region19: #{tpu_custom_call.1} parent=1 // pred_check_branch
      %814 = sbr.rel (0) target = $region21
    $region20: #{tpu_custom_call.1} parent=1 // pred_region
      %816 = dma.done [#allocation5], 32768
    $region21: #{tpu_custom_call.1} parent=1 // pred_fallthru
      _
    %817 = vsyncpa [#allocation4], 1
    %818 = vsyncpa [#allocation5], 1

</llo_original>
